<compile_context>
chip_gen: v7x
topology: tpu7x:2x2x1
jax: 0.10.0
libtpu: 0.0.40
codegen_flags: <defaults>
</compile_context>

<pallas_src>
import jax
import jax.numpy as jnp
from jax.experimental import pallas as pl
from jax.experimental.pallas import tpu as pltpu


def sts_head_kernel(left_ref, right_ref, wl_ref, wr_ref, b_ref, out_ref):
    """Fused cat -> Linear(2H,1) -> sigmoid -> *5 for one batch tile.

    The concat is algebraically split:
        proj([L, R]) = L @ w_left + R @ w_right + bias
    so no actual concatenation / data movement is needed.  Both dots run on the
    MXU with f32 accumulation; inputs stay in their native dtype.
    """
    logit = jnp.dot(left_ref[...], wl_ref[...],
                    preferred_element_type=jnp.float32)         # (tile_b, 1)
    logit = logit + jnp.dot(right_ref[...], wr_ref[...],
                            preferred_element_type=jnp.float32)  # (tile_b, 1)
    logit = logit + b_ref[0, 0]                                  # scalar (SMEM)
    out_ref[...] = 5.0 * jax.nn.sigmoid(logit)


def _round_up(x, m):
    return ((x + m - 1) // m) * m


def _choose_tile_b(batch, hidden, itemsize, sub):
    """Pick the batch tile.

    Double-buffered input pair (2 inputs x 2 buffers x tile_b x H x itemsize)
    is kept <= ~24 MiB (paired with an explicit 48 MiB vmem limit below), the
    tile is a multiple of the dtype's sublane packing factor, and — if the
    batch allows it — the grid is forced to have >= 2 steps so the "parallel"
    axis can actually be sharded across v7x's two TensorCores.
    """
    budget_bytes = 24 * 1024 * 1024
    tile = budget_bytes // max(1, 4 * hidden * itemsize)
    tile = max(sub, min(int(tile), 4096))
    tile = (tile // sub) * sub
    tile = min(tile, _round_up(batch, sub))
    if tile >= batch and batch > sub:
        half = _round_up((batch + 1) // 2, sub)
        tile = max(sub, min(tile, half))
    return tile


def _sts_head_reference(left, right, weight, bias):
    """Plain-JAX forward (also the tiny-input fast path)."""
    H = left.shape[1]
    wl = weight[:, :H].astype(jnp.float32)
    wr = weight[:, H:].astype(jnp.float32)
    logit = (left.astype(jnp.float32) @ wl.T
             + right.astype(jnp.float32) @ wr.T
             + bias.astype(jnp.float32))
    return 5.0 * jax.nn.sigmoid(logit)


def sts_head(left, right, weight, bias, *, force_pallas=False):
    """left, right: (B, H) pooler outputs; weight: (1, 2H); bias: (1,).

    Returns (B, 1) float32, matching 5 * sigmoid(Linear(2H,1)(cat([L, R]))).
    """
    B, H = left.shape
    assert right.shape == (B, H)
    assert weight.shape == (1, 2 * H)
    assert bias.shape == (1,)

    in_dtype = left.dtype
    itemsize = jnp.dtype(in_dtype).itemsize

    # Tiny-input fast path: the kernel launch / residency setup costs more than
    # the op itself; XLA fuses this head for free at that size.
    if not force_pallas and 2 * B * H * itemsize < (1 << 20):
        return _sts_head_reference(left, right, weight, bias)

    # Sublane packing multiple for the input dtype (8 f32 / 16 bf16 / 32 int8).
    sub = max(8, 32 // itemsize)

    # Corner case only: if the batch is smaller than one sublane tile, pad a
    # handful of rows (<= sub-1) so the block's sublane dim stays within the
    # array.  This is NOT the old full-tile pad; its HBM cost is negligible.
    if B < sub:
        left = jnp.pad(left, ((0, sub - B), (0, 0)))
        right = jnp.pad(right, ((0, sub - B), (0, 0)))
    B_eff = max(B, sub)

    tile_b = _choose_tile_b(B_eff, H, itemsize, sub)
    num_tiles = pl.cdiv(B_eff, tile_b)

    # Split the (1, 2H) weight into the halves acting on left / right (matching
    # torch.cat([left, right], dim=1) @ W.T), as (H, 1) columns for the MXU.
    # Cast to the input dtype so the dot stays native (bf16 MXU / f32 MXU).
    w_left = weight[:, :H].reshape(H, 1).astype(in_dtype)
    w_right = weight[:, H:].reshape(H, 1).astype(in_dtype)
    b2d = bias.reshape(1, 1).astype(jnp.float32)

    cost = pl.CostEstimate(
        flops=4 * B_eff * H,
        transcendentals=4 * B_eff,  # advisory: exp + reciprocal per row
        bytes_accessed=2 * B_eff * H * itemsize + 2 * H * itemsize + 4 + B_eff * 4,
    )

    out = pl.pallas_call(
        sts_head_kernel,
        out_shape=jax.ShapeDtypeStruct((B_eff, 1), jnp.float32),
        grid=(num_tiles,),
        in_specs=[
            pl.BlockSpec((tile_b, H), lambda i: (i, 0)),          # left tile
            pl.BlockSpec((tile_b, H), lambda i: (i, 0)),          # right tile
            pl.BlockSpec((H, 1), lambda i: (0, 0)),               # w_left (resident)
            pl.BlockSpec((H, 1), lambda i: (0, 0)),               # w_right (resident)
            pl.BlockSpec(memory_space=pltpu.MemorySpace.SMEM),    # bias scalar
        ],
        out_specs=pl.BlockSpec((tile_b, 1), lambda i: (i, 0)),
        compiler_params=pltpu.CompilerParams(
            dimension_semantics=("parallel",),
            vmem_limit_bytes=48 * 1024 * 1024,
        ),
        cost_estimate=cost,
    )(left, right, w_left, w_right, b2d)

    # Garbage rows from the partial last tile / sublane pad are discarded here.
    # NOTE: rows must stay independent (no cross-row reduction in the kernel)
    # for this out-of-bounds-read scheme to remain correct.
    return out[:B]


def init_proj_params(key, hidden_size):
    """Deterministic init mimicking nn.Linear(2*H, 1): U(-1/sqrt(fan_in), ...)."""
    fan_in = 2 * hidden_size
    bound = 1.0 / (fan_in ** 0.5)
    kw, kb = jax.random.split(key)
    weight = jax.random.uniform(kw, (1, fan_in), jnp.float32, -bound, bound)
    bias = jax.random.uniform(kb, (1,), jnp.float32, -bound, bound)
    return weight, bias


if __name__ == "__main__":
    key = jax.random.PRNGKey(0)
    k_params, k1, k2, k3, k4, k5, k6 = jax.random.split(key, 7)

    def check(B, H, kl, kr, force_pallas):
        weight, bias = init_proj_params(k_params, H)
        # Stand-ins for the two BERT pooler outputs.
        left = jax.random.normal(kl, (B, H), jnp.float32)
        right = jax.random.normal(kr, (B, H), jnp.float32)
        out = jax.block_until_ready(
            sts_head(left, right, weight, bias, force_pallas=force_pallas))
        ref = _sts_head_reference(left, right, weight, bias)
        assert out.shape == (B, 1), (out.shape, B)
        assert jnp.allclose(out, ref, atol=1e-4, rtol=1e-4), (B, H)

    # Pallas path, aligned batch -> 2-step grid (exercises megacore sharding).
    check(16, 32, k1, k2, force_pallas=True)
    # Pallas path, unaligned batch -> partial last tile (no host-side pad).
    check(300, 64, k3, k4, force_pallas=True)
    # Tiny-input plain-JAX fast path (module's typical eval micro-batch).
    check(2, 32, k5, k6, force_pallas=False)

    print("KERNEL_OK")
</pallas_src>

<mosaic_0001>
module attributes {stable_mosaic.version = 11 : i64} {
  func.func @sts_head_kernel(%arg0: i32, %arg1: memref<8x32xf32, #tpu.memory_space<vmem>>, %arg2: memref<8x32xf32, #tpu.memory_space<vmem>>, %arg3: memref<32x1xf32, #tpu.memory_space<vmem>>, %arg4: memref<32x1xf32, #tpu.memory_space<vmem>>, %arg5: memref<1x1xf32, #tpu.memory_space<smem>>, %arg6: memref<8x1xf32, #tpu.memory_space<vmem>>) attributes {dimension_semantics = [#tpu.dimension_semantics<parallel>], iteration_bounds = array<i64: 2>, scalar_prefetch = 0 : i64, scratch_operands = 0 : i64, tpu.core_type = #tpu.core_type<tc>, window_params = [{transform_indices = @transform_0, window_bounds = array<i64: 8, 32>}, {transform_indices = @transform_1, window_bounds = array<i64: 8, 32>}, {pipeline_mode = #tpu.pipeline_mode<synchronous>, transform_indices = @transform_2, window_bounds = array<i64: 32, 1>}, {pipeline_mode = #tpu.pipeline_mode<synchronous>, transform_indices = @transform_3, window_bounds = array<i64: 32, 1>}, {transform_indices = @transform_4, window_bounds = array<i64: 1, 1>}, {transform_indices = @transform_5, window_bounds = array<i64: 8, 1>}]} {
    %c0 = arith.constant 0 : index
    %c0_0 = arith.constant 0 : index
    %0 = vector.load %arg1[%c0, %c0_0] : memref<8x32xf32, #tpu.memory_space<vmem>>, vector<8x32xf32>
    %c0_1 = arith.constant 0 : index
    %c0_2 = arith.constant 0 : index
    %1 = vector.load %arg3[%c0_1, %c0_2] : memref<32x1xf32, #tpu.memory_space<vmem>>, vector<32x1xf32>
    %cst = arith.constant dense<0.000000e+00> : vector<8x1xf32>
    %2 = tpu.matmul %0, %1, %cst {dimension_numbers = #tpu.dot_dimension_numbers<[1], [0], [0], [1], [0, 0, 1, 1], [], []>} : vector<8x32xf32>, vector<32x1xf32>, vector<8x1xf32> -> vector<8x1xf32>
    %c0_3 = arith.constant 0 : index
    %c0_4 = arith.constant 0 : index
    %3 = vector.load %arg2[%c0_3, %c0_4] : memref<8x32xf32, #tpu.memory_space<vmem>>, vector<8x32xf32>
    %c0_5 = arith.constant 0 : index
    %c0_6 = arith.constant 0 : index
    %4 = vector.load %arg4[%c0_5, %c0_6] : memref<32x1xf32, #tpu.memory_space<vmem>>, vector<32x1xf32>
    %cst_7 = arith.constant dense<0.000000e+00> : vector<8x1xf32>
    %5 = tpu.matmul %3, %4, %cst_7 {dimension_numbers = #tpu.dot_dimension_numbers<[1], [0], [0], [1], [0, 0, 1, 1], [], []>} : vector<8x32xf32>, vector<32x1xf32>, vector<8x1xf32> -> vector<8x1xf32>
    %6 = arith.addf %2, %5 : vector<8x1xf32>
    %c0_8 = arith.constant 0 : index
    %c0_9 = arith.constant 0 : index
    %7 = memref.load %arg5[%c0_8, %c0_9] : memref<1x1xf32, #tpu.memory_space<smem>>
    %8 = vector.broadcast %7 : f32 to vector<8x1xf32>
    %9 = arith.addf %6, %8 : vector<8x1xf32>
    %10 = arith.negf %9 : vector<8x1xf32>
    %11 = math.exp %10 : vector<8x1xf32>
    %cst_10 = arith.constant 1.000000e+00 : f32
    %12 = vector.broadcast %cst_10 : f32 to vector<8x1xf32>
    %13 = arith.addf %12, %11 : vector<8x1xf32>
    %14 = arith.divf %12, %13 : vector<8x1xf32>
    %cst_11 = arith.constant 5.000000e+00 : f32
    %15 = vector.broadcast %cst_11 : f32 to vector<8x1xf32>
    %16 = arith.mulf %15, %14 : vector<8x1xf32>
    %c0_12 = arith.constant 0 : index
    %c0_13 = arith.constant 0 : index
    %17 = vector.load %arg6[%c0_12, %c0_13] : memref<8x1xf32, #tpu.memory_space<vmem>>, vector<8x1xf32>
    tpu.vector_store %arg6[%c0_12, %c0_13], %16 {strides = array<i32>} : memref<8x1xf32, #tpu.memory_space<vmem>>, vector<8x1xf32>,
    return
  }
  func.func @transform_0(%arg0: i32) -> (i32, i32) {
    %c0_i32 = arith.constant 0 : i32
    %c0_i32_0 = arith.constant 0 : i32
    return %arg0, %c0_i32 : i32, i32
  }
  func.func @transform_1(%arg0: i32) -> (i32, i32) {
    %c0_i32 = arith.constant 0 : i32
    %c0_i32_0 = arith.constant 0 : i32
    return %arg0, %c0_i32 : i32, i32
  }
  func.func @transform_2(%arg0: i32) -> (i32, i32) {
    %c0_i32 = arith.constant 0 : i32
    %c0_i32_0 = arith.constant 0 : i32
    %c0_i32_1 = arith.constant 0 : i32
    return %c0_i32, %c0_i32_0 : i32, i32
  }
  func.func @transform_3(%arg0: i32) -> (i32, i32) {
    %c0_i32 = arith.constant 0 : i32
    %c0_i32_0 = arith.constant 0 : i32
    %c0_i32_1 = arith.constant 0 : i32
    return %c0_i32, %c0_i32_0 : i32, i32
  }
  func.func @transform_4(%arg0: i32) -> (i32, i32) {
    %c0_i32 = arith.constant 0 : i32
    %c0_i32_0 = arith.constant 0 : i32
    %c0_i32_1 = arith.constant 0 : i32
    return %c0_i32, %c0_i32_0 : i32, i32
  }
  func.func @transform_5(%arg0: i32) -> (i32, i32) {
    %c0_i32 = arith.constant 0 : i32
    %c0_i32_0 = arith.constant 0 : i32
    return %arg0, %c0_i32 : i32, i32
  }
}

</mosaic_0001>

<llo_original>
// kernel: tpu_custom_call.1
$region0: #{tpu_custom_call.1}
  #allocation0 [shape = 'u32[]', space=smem, size = 0x4, offset = 0x4, fixed_abs, tag = 'smem constant byte address 0x4 - core index']
  #allocation1 [shape = 'u32[144,128]{1,0:T(1,128)}', space=vmem, size = 0x12000, scoped, tag = 'internal scratch']
  #allocation2 [shape = 'f32[1,1]{1,0:T(1,128)S(6)}', space=smem, size = 0x200, scoped, tag = 'scoped memory for tpu_custom_call.1']
  %s0 = inlined_call_operand.vmem [shape: f32[16,32], index: 0, kind: input, shape index: {}]
  %s1 = inlined_call_operand.vmem [shape: f32[16,32], index: 1, kind: input, shape index: {}]
  %s2 = inlined_call_operand.vmem [shape: f32[32,1], index: 2, kind: input, shape index: {}]
  %s3 = inlined_call_operand.vmem [shape: f32[32,1], index: 3, kind: input, shape index: {}]
  %s4 = inlined_call_operand.<no memory space> [shape: f32[1,1], index: 4, kind: input, shape index: {}]
  %s5 = inlined_call_operand.vmem [shape: f32[16,1], index: 5, kind: output, shape index: {}]
  %s6 = sld [smem:[#allocation0]]
  $region53: #{tpu_custom_call.1} parent=0
    _
  %s8 = ssub.s32 1, %s6
  %s9 = scalar_select 0, %s8, %s6
  %10 = sst [smem:[#allocation2]] %s4
  loop: start=0, step=1, limit=4
  $region2: #{tpu_custom_call.1} parent=0 // loop_pre_header
    _
  $region3: #{tpu_custom_call.1} parent=0 // loop_header
    %s12 = sphi 0, %s16
    %p13 = scmp.ge.s32.totalorder %s12, 4
    %s22 = sphi 0, %s24
    %s25 = sphi 0, %s22
    %s26 = sphi 0, %s25
    %s42 = sphi 0, %s26
    %s48 = sphi 0, %s50
    %s51 = sphi 0, %s48
    %s52 = sphi 0, %s51
    %s68 = sphi 0, %s52
    %s72 = sphi 0, %s72
    %s74 = sphi 0, %s72
    %s75 = sphi 0, %s74
    %s89 = sphi 0, %s75
    %s93 = sphi 0, %s93
    %s95 = sphi 0, %s93
    %s96 = sphi 0, %s95
    %s110 = sphi 0, %s96
    %s114 = sphi 0, %s114
    %s116 = sphi 0, %s114
    %s117 = sphi 0, %s116
    %s131 = sphi 0, %s117
    %s137 = sphi 0, %s139
    %s140 = sphi 0, %s137
    %s141 = sphi 0, %s140
    %s157 = sphi 0, %s141
  $region4: #{tpu_custom_call.1} parent=0 // loop_header_branch
    %15 = sbr.rel (%p13) target = $region8
  $region5: #{tpu_custom_call.1} parent=0 // loop_body
    %s17 = ssub.s32 %s12, 1
    %s18 = ssub.s32 %s12, 2
    %s19 = sadd.s32 %s12, 1
    %s20 = ssub.s32 %s12, %s19
    %p21 = scmp.eq.s32.totalorder %s20, 0
    %s23 = sadd.s32 %s22, 1
    %s24 = scalar_select %p21, %s22, %s23
    %p27 = pneg %p21
    %p28 = scmp.eq.s32.totalorder %s12, 1
    %p29 = por %p27, %p28
    %p30 = scmp.ne.s32.totalorder %s22, %s25
    %p31 = scmp.eq.s32.totalorder %s12, 0
    %p32 = por %p30, %p31
    %p33 = scmp.ne.s32.totalorder %s22, %s25
    %p34 = scmp.eq.s32.totalorder %s17, 1
    %p35 = por %p33, %p34
    %p36 = scmp.ne.s32.totalorder %s25, %s26
    %p37 = scmp.eq.s32.totalorder %s17, 0
    %p38 = por %p36, %p37
    %p39 = scmp.ne.s32.totalorder %s25, %s26
    %p40 = scmp.eq.s32.totalorder %s18, 1
    %p41 = por %p39, %p40
    %p43 = scmp.ne.s32.totalorder %s26, %s42
    %p44 = scmp.eq.s32.totalorder %s18, 0
    %p45 = por %p43, %p44
    %s46 = ssub.s32 %s12, %s19
    %p47 = scmp.eq.s32.totalorder %s46, 0
    %s49 = sadd.s32 %s48, 1
    %s50 = scalar_select %p47, %s48, %s49
    %p53 = pneg %p47
    %p54 = scmp.eq.s32.totalorder %s12, 1
    %p55 = por %p53, %p54
    %p56 = scmp.ne.s32.totalorder %s48, %s51
    %p57 = scmp.eq.s32.totalorder %s12, 0
    %p58 = por %p56, %p57
    %p59 = scmp.ne.s32.totalorder %s48, %s51
    %p60 = scmp.eq.s32.totalorder %s17, 1
    %p61 = por %p59, %p60
    %p62 = scmp.ne.s32.totalorder %s51, %s52
    %p63 = scmp.eq.s32.totalorder %s17, 0
    %p64 = por %p62, %p63
    %p65 = scmp.ne.s32.totalorder %s51, %s52
    %p66 = scmp.eq.s32.totalorder %s18, 1
    %p67 = por %p65, %p66
    %p69 = scmp.ne.s32.totalorder %s52, %s68
    %p70 = scmp.eq.s32.totalorder %s18, 0
    %p71 = por %p69, %p70
    %s73 = sadd.s32 %s72, 1
    %p76 = scmp.eq.s32.totalorder %s12, 1
    %p77 = scmp.ne.s32.totalorder %s72, %s74
    %p78 = scmp.eq.s32.totalorder %s12, 0
    %p79 = por %p77, %p78
    %p80 = scmp.ne.s32.totalorder %s72, %s74
    %p81 = scmp.eq.s32.totalorder %s17, 1
    %p82 = por %p80, %p81
    %p83 = scmp.ne.s32.totalorder %s74, %s75
    %p84 = scmp.eq.s32.totalorder %s17, 0
    %p85 = por %p83, %p84
    %p86 = scmp.ne.s32.totalorder %s74, %s75
    %p87 = scmp.eq.s32.totalorder %s18, 1
    %p88 = por %p86, %p87
    %p90 = scmp.ne.s32.totalorder %s75, %s89
    %p91 = scmp.eq.s32.totalorder %s18, 0
    %p92 = por %p90, %p91
    %s94 = sadd.s32 %s93, 1
    %p97 = scmp.eq.s32.totalorder %s12, 1
    %p98 = scmp.ne.s32.totalorder %s93, %s95
    %p99 = scmp.eq.s32.totalorder %s12, 0
    %p100 = por %p98, %p99
    %p101 = scmp.ne.s32.totalorder %s93, %s95
    %p102 = scmp.eq.s32.totalorder %s17, 1
    %p103 = por %p101, %p102
    %p104 = scmp.ne.s32.totalorder %s95, %s96
    %p105 = scmp.eq.s32.totalorder %s17, 0
    %p106 = por %p104, %p105
    %p107 = scmp.ne.s32.totalorder %s95, %s96
    %p108 = scmp.eq.s32.totalorder %s18, 1
    %p109 = por %p107, %p108
    %p111 = scmp.ne.s32.totalorder %s96, %s110
    %p112 = scmp.eq.s32.totalorder %s18, 0
    %p113 = por %p111, %p112
    %s115 = sadd.s32 %s114, 1
    %p118 = scmp.eq.s32.totalorder %s12, 1
    %p119 = scmp.ne.s32.totalorder %s114, %s116
    %p120 = scmp.eq.s32.totalorder %s12, 0
    %p121 = por %p119, %p120
    %p122 = scmp.ne.s32.totalorder %s114, %s116
    %p123 = scmp.eq.s32.totalorder %s17, 1
    %p124 = por %p122, %p123
    %p125 = scmp.ne.s32.totalorder %s116, %s117
    %p126 = scmp.eq.s32.totalorder %s17, 0
    %p127 = por %p125, %p126
    %p128 = scmp.ne.s32.totalorder %s116, %s117
    %p129 = scmp.eq.s32.totalorder %s18, 1
    %p130 = por %p128, %p129
    %p132 = scmp.ne.s32.totalorder %s117, %s131
    %p133 = scmp.eq.s32.totalorder %s18, 0
    %p134 = por %p132, %p133
    %s135 = ssub.s32 %s12, %s19
    %p136 = scmp.eq.s32.totalorder %s135, 0
    %s138 = sadd.s32 %s137, 1
    %s139 = scalar_select %p136, %s137, %s138
    %p142 = pneg %p136
    %p143 = scmp.eq.s32.totalorder %s12, 1
    %p144 = por %p142, %p143
    %p145 = scmp.ne.s32.totalorder %s137, %s140
    %p146 = scmp.eq.s32.totalorder %s12, 0
    %p147 = por %p145, %p146
    %p148 = scmp.ne.s32.totalorder %s137, %s140
    %p149 = scmp.eq.s32.totalorder %s17, 1
    %p150 = por %p148, %p149
    %p151 = scmp.ne.s32.totalorder %s140, %s141
    %p152 = scmp.eq.s32.totalorder %s17, 0
    %p153 = por %p151, %p152
    %p154 = scmp.ne.s32.totalorder %s140, %s141
    %p155 = scmp.eq.s32.totalorder %s18, 1
    %p156 = por %p154, %p155
    %p158 = scmp.ne.s32.totalorder %s141, %s157
    %p159 = scmp.eq.s32.totalorder %s18, 0
    %p160 = por %p158, %p159
    %p161 = scmp.le.s32.totalorder 1, %s12
    %p162 = scmp.lt.s32.totalorder %s12, 3
    %p163 = pnand %p161, %p162
    %p164 = pneg %p163
    // Predicated region
    $region9: #{tpu_custom_call.1} parent=5 // pred_check
      _
    $region10: #{tpu_custom_call.1} parent=5 // pred_check_branch
      %166 = sbr.rel (%p163) target = $region12
    $region11: #{tpu_custom_call.1} parent=5 // pred_region
      %s167 = ssub.s32 %s12, 1
      // Predicated region
      $region13: #{tpu_custom_call.1} parent=11 // pred_check
        %p168 = pneg %p85
      $region14: #{tpu_custom_call.1} parent=11 // pred_check_branch
        %170 = sbr.rel (%p168) target = $region16
      $region15: #{tpu_custom_call.1} parent=11 // pred_region
        _
      $region16: #{tpu_custom_call.1} parent=11 // pred_fallthru
        _
      // Predicated region
      $region17: #{tpu_custom_call.1} parent=11 // pred_check
        %p171 = pneg %p106
      $region18: #{tpu_custom_call.1} parent=11 // pred_check_branch
        %173 = sbr.rel (%p171) target = $region20
      $region19: #{tpu_custom_call.1} parent=11 // pred_region
        _
      $region20: #{tpu_custom_call.1} parent=11 // pred_fallthru
        _
      // Predicated region
      $region21: #{tpu_custom_call.1} parent=11 // pred_check
        %p174 = pneg %p127
      $region22: #{tpu_custom_call.1} parent=11 // pred_check_branch
        %176 = sbr.rel (%p174) target = $region24
      $region23: #{tpu_custom_call.1} parent=11 // pred_region
        _
      $region24: #{tpu_custom_call.1} parent=11 // pred_fallthru
        _
    $region12: #{tpu_custom_call.1} parent=5 // pred_fallthru
      _
    %p177 = scmp.lt.s32.totalorder %s12, 2
    // Predicated region
    $region25: #{tpu_custom_call.1} parent=5 // pred_check
      %p178 = pneg %p177
    $region26: #{tpu_custom_call.1} parent=5 // pred_check_branch
      %180 = sbr.rel (%p178) target = $region28
    $region27: #{tpu_custom_call.1} parent=5 // pred_region
      // Predicated region
      $region29: #{tpu_custom_call.1} parent=27 // pred_check
        %p181 = pneg %p32
      $region30: #{tpu_custom_call.1} parent=27 // pred_check_branch
        %183 = sbr.rel (%p181) target = $region32
      $region31: #{tpu_custom_call.1} parent=27 // pred_region
        %p184 = scmp.lt.s32.totalorder %s12, 1
        %s185 = scalar_select %p184, %s12, 1
        %s186 = smul.addr %s185, 8
        %s187 = scalar_lea.vmem %s0, %s186
      $region32: #{tpu_custom_call.1} parent=27 // pred_fallthru
        _
      // Predicated region
      $region33: #{tpu_custom_call.1} parent=27 // pred_check
        %p188 = pneg %p58
      $region34: #{tpu_custom_call.1} parent=27 // pred_check_branch
        %190 = sbr.rel (%p188) target = $region36
      $region35: #{tpu_custom_call.1} parent=27 // pred_region
        %p191 = scmp.lt.s32.totalorder %s12, 1
        %s192 = scalar_select %p191, %s12, 1
        %s193 = smul.addr %s192, 8
        %s194 = scalar_lea.vmem %s1, %s193
      $region36: #{tpu_custom_call.1} parent=27 // pred_fallthru
        _
    $region28: #{tpu_custom_call.1} parent=5 // pred_fallthru
      _
    %p195 = scmp.le.s32.totalorder 1, %s12
    %p196 = scmp.lt.s32.totalorder %s12, 3
    %p197 = pnand %p195, %p196
    %p198 = pneg %p197
    // Predicated region
    $region37: #{tpu_custom_call.1} parent=5 // pred_check
      _
    $region38: #{tpu_custom_call.1} parent=5 // pred_check_branch
      %200 = sbr.rel (%p197) target = $region40
    $region39: #{tpu_custom_call.1} parent=5 // pred_region
      %s201 = ssub.s32 %s12, 1
      %p202 = scmp.lt.s32.totalorder %s17, 1
      %s203 = scalar_select %p202, %s17, 1
      %s204 = smul.addr %s203, 8
      %s205 = scalar_lea.vmem %s0, %s204
      %p206 = pneg %p38
      %p207 = pneg %p35
      %p208 = scmp.lt.s32.totalorder %s17, 1
      %s209 = scalar_select %p208, %s17, 1
      %s210 = smul.addr %s209, 8
      %s211 = scalar_lea.vmem %s1, %s210
      %p212 = pneg %p64
      %p213 = pneg %p61
      %p214 = pneg %p85
      %p215 = pneg %p82
      %p216 = pneg %p106
      %p217 = pneg %p103
      %p218 = pneg %p127
      %p219 = pneg %p124
      %p220 = pneg %p153
      %p221 = pneg %p150
      %p222 = scmp.lt.s32.totalorder %s17, 1
      %s223 = scalar_select %p222, %s17, 1
      %s224 = smul.addr %s223, 8
      %s225 = scalar_lea.vmem %s5, %s224
      %p226 = scmp.lt.s32.totalorder %s17, 1
      %s227 = scalar_select %p226, %s17, 1
      %s228 = smul.addr %s227, 8
      %s229 = scalar_lea.vmem %s0, %s228
      %p230 = scmp.lt.s32.totalorder %s17, 1
      %s231 = scalar_select %p230, %s17, 1
      %s232 = smul.addr %s231, 8
      %s233 = scalar_lea.vmem %s1, %s232
      %p234 = scmp.lt.s32.totalorder %s17, 1
      %s235 = scalar_select %p234, %s17, 1
      %s236 = smul.addr %s235, 8
      %s237 = scalar_lea.vmem %s5, %s236
      %v238 = vld [vmem:[%s229] sm:$0xff]
      %v239 = vld [vmem:[%s2] sm:$0xff]
      %v240 = vld [vmem:[%s2 + $0x8] sm:$0xff]
      %v241 = vld [vmem:[%s2 + $0x10] sm:$0xff]
      %v242 = vld [vmem:[%s2 + $0x18] sm:$0xff]
      %v243 = vld [vmem:[%s233] sm:$0xff]
      %v244 = vld [vmem:[%s3] sm:$0xff]
      %v245 = vld [vmem:[%s3 + $0x8] sm:$0xff]
      %v246 = vld [vmem:[%s3 + $0x10] sm:$0xff]
      %v247 = vld [vmem:[%s3 + $0x18] sm:$0xff]
      %vm248 = vcmask 261120
      %v250 = vsel %vm248, %v243, 0
      %252 = vmatprep.subr.mxu0 0.0
      %253 = vmatpush1.msra.mxu0 %v244
      %254 = vmatprep.subr.mxu0 0.0
      %255 = vmatpush1.msra.mxu0 %v245
      %256 = vmatprep.subr.mxu0 0.0
      %257 = vmatpush1.msra.mxu0 %v246
      %258 = vmatprep.subr.mxu0 0.0
      %259 = vmatpush1.msra.mxu0 %v247
      %260 = vmatprep.subr.mxu0 0.0
      %261 = vmatpush1.msra.mxu0 0.0
      %262 = vmatprep.subr.mxu0 0.0
      %263 = vmatpush1.msra.mxu0 0.0
      %264 = vmatprep.subr.mxu0 0.0
      %265 = vmatpush1.msra.mxu0 0.0
      %266 = vmatprep.subr.mxu0 0.0
      %267 = vmatpush1.msra.mxu0 0.0
      %268 = vmatprep.subr.mxu0 0.0
      %269 = vmatpush1.msra.mxu0 0.0
      %270 = vmatprep.subr.mxu0 0.0
      %271 = vmatpush1.msra.mxu0 0.0
      %272 = vmatprep.subr.mxu0 0.0
      %273 = vmatpush1.msra.mxu0 0.0
      %274 = vmatprep.subr.mxu0 0.0
      %275 = vmatpush1.msra.mxu0 0.0
      %276 = vmatprep.subr.mxu0 0.0
      %277 = vmatpush1.msra.mxu0 0.0
      %278 = vmatprep.subr.mxu0 0.0
      %279 = vmatpush1.msra.mxu0 0.0
      %280 = vmatprep.subr.mxu0 0.0
      %281 = vmatpush1.msra.mxu0 0.0
      %282 = vmatprep.subr.mxu0 0.0
      %283 = vmatpush1.msra.mxu0 0.0
      %284 = vmatprep.subr.mxu0 0.0
      %285 = vmatpush1.msra.mxu0 0.0
      %286 = vmatprep.subr.mxu0 0.0
      %287 = vmatpush1.msra.mxu0 0.0
      %288 = vmatprep.subr.mxu0 0.0
      %289 = vmatpush1.msra.mxu0 0.0
      %290 = vmatprep.subr.mxu0 0.0
      %291 = vmatpush1.msra.mxu0 0.0
      %292 = vmatprep.subr.mxu0 0.0
      %293 = vmatpush1.msra.mxu0 0.0
      %294 = vmatprep.subr.mxu0 0.0
      %295 = vmatpush1.msra.mxu0 0.0
      %296 = vmatprep.subr.mxu0 0.0
      %297 = vmatpush1.msra.mxu0 0.0
      %298 = vmatprep.subr.mxu0 0.0
      %299 = vmatpush1.msra.mxu0 0.0
      %300 = vmatprep.subr.mxu0 0.0
      %301 = vmatpush1.msra.mxu0 0.0
      %302 = vmatprep.subr.mxu0 0.0
      %303 = vmatpush1.msra.mxu0 0.0
      %304 = vmatprep.subr.mxu0 0.0
      %305 = vmatpush1.msra.mxu0 0.0
      %306 = vmatprep.subr.mxu0 0.0
      %307 = vmatpush1.msra.mxu0 0.0
      %308 = vmatprep.subr.mxu0 0.0
      %309 = vmatpush1.msra.mxu0 0.0
      %310 = vmatprep.subr.mxu0 0.0
      %311 = vmatpush1.msra.mxu0 0.0
      %312 = vmatprep.subr.mxu0 0.0
      %313 = vmatpush1.msra.mxu0 0.0
      %314 = vmatprep.subr.mxu0 0.0
      %315 = vmatpush1.msra.mxu0 0.0
      %316 = vmatprep.mubr.f32.mxu0 0.0
      %317 = vmatmul.mubr.f32.gmra.mrb[0].mxu0 %v250
      %v318 = vpop.f32.mrb[0].mxu0
      %v319 = vadd.f32 0.0, %v318
      %v320 = vpop.f32.mrb[0].mxu0
      %321 = vdwg.mxu0
      %v323 = vsel %vm248, %v238, 0
      %325 = vmatprep.subr.mxu0 0.0
      %326 = vmatpush1.msra.mxu0 %v239
      %327 = vmatprep.subr.mxu0 0.0
      %328 = vmatpush1.msra.mxu0 %v240
      %329 = vmatprep.subr.mxu0 0.0
      %330 = vmatpush1.msra.mxu0 %v241
      %331 = vmatprep.subr.mxu0 0.0
      %332 = vmatpush1.msra.mxu0 %v242
      %333 = vmatprep.subr.mxu0 0.0
      %334 = vmatpush1.msra.mxu0 0.0
      %335 = vmatprep.subr.mxu0 0.0
      %336 = vmatpush1.msra.mxu0 0.0
      %337 = vmatprep.subr.mxu0 0.0
      %338 = vmatpush1.msra.mxu0 0.0
      %339 = vmatprep.subr.mxu0 0.0
      %340 = vmatpush1.msra.mxu0 0.0
      %341 = vmatprep.subr.mxu0 0.0
      %342 = vmatpush1.msra.mxu0 0.0
      %343 = vmatprep.subr.mxu0 0.0
      %344 = vmatpush1.msra.mxu0 0.0
      %345 = vmatprep.subr.mxu0 0.0
      %346 = vmatpush1.msra.mxu0 0.0
      %347 = vmatprep.subr.mxu0 0.0
      %348 = vmatpush1.msra.mxu0 0.0
      %349 = vmatprep.subr.mxu0 0.0
      %350 = vmatpush1.msra.mxu0 0.0
      %351 = vmatprep.subr.mxu0 0.0
      %352 = vmatpush1.msra.mxu0 0.0
      %353 = vmatprep.subr.mxu0 0.0
      %354 = vmatpush1.msra.mxu0 0.0
      %355 = vmatprep.subr.mxu0 0.0
      %356 = vmatpush1.msra.mxu0 0.0
      %357 = vmatprep.subr.mxu0 0.0
      %358 = vmatpush1.msra.mxu0 0.0
      %359 = vmatprep.subr.mxu0 0.0
      %360 = vmatpush1.msra.mxu0 0.0
      %361 = vmatprep.subr.mxu0 0.0
      %362 = vmatpush1.msra.mxu0 0.0
      %363 = vmatprep.subr.mxu0 0.0
      %364 = vmatpush1.msra.mxu0 0.0
      %365 = vmatprep.subr.mxu0 0.0
      %366 = vmatpush1.msra.mxu0 0.0
      %367 = vmatprep.subr.mxu0 0.0
      %368 = vmatpush1.msra.mxu0 0.0
      %369 = vmatprep.subr.mxu0 0.0
      %370 = vmatpush1.msra.mxu0 0.0
      %371 = vmatprep.subr.mxu0 0.0
      %372 = vmatpush1.msra.mxu0 0.0
      %373 = vmatprep.subr.mxu0 0.0
      %374 = vmatpush1.msra.mxu0 0.0
      %375 = vmatprep.subr.mxu0 0.0
      %376 = vmatpush1.msra.mxu0 0.0
      %377 = vmatprep.subr.mxu0 0.0
      %378 = vmatpush1.msra.mxu0 0.0
      %379 = vmatprep.subr.mxu0 0.0
      %380 = vmatpush1.msra.mxu0 0.0
      %381 = vmatprep.subr.mxu0 0.0
      %382 = vmatpush1.msra.mxu0 0.0
      %383 = vmatprep.subr.mxu0 0.0
      %384 = vmatpush1.msra.mxu0 0.0
      %385 = vmatprep.subr.mxu0 0.0
      %386 = vmatpush1.msra.mxu0 0.0
      %387 = vmatprep.subr.mxu0 0.0
      %388 = vmatpush1.msra.mxu0 0.0
      %389 = vmatprep.mubr.f32.mxu0 0.0
      %390 = vmatmul.mubr.f32.gmra.mrb[0].mxu0 %v323
      %v391 = vpop.f32.mrb[0].mxu0
      %v392 = vadd.f32 %v319, %v391
      %v393 = vpop.f32.mrb[0].mxu0
      %394 = vdwg.mxu0
      %s395 = sld [smem:[#allocation2]]
      %v396 = vstv %s395
      %v397 = vadd.f32 %v392, %v396
      %v398 = vxor.u32 %v397, 2147483648
      %v399 = vmul.f32 %v398, 1.442695
      %v400 = vpow.pop %v399
      %v401 = vadd.f32 %v400, 1.0
      %v402 = vrcp.pop %v401
      %v403 = vmul.f32 1.0, %v402
      %v404 = vmul.f32 %v403, 5.0
      %vm405 = vcmask 7168
      %406 = vst.msk [vmem:[%s237] sm:$0xff] %vm405, %v404
      %p407 = scmp.lt.s32.totalorder %s17, 1
      %s408 = scalar_select %p407, %s17, 1
      %s409 = smul.addr %s408, 8
      %s410 = scalar_lea.vmem %s5, %s409
      // Predicated region
      $region41: #{tpu_custom_call.1} parent=39 // pred_check
        %p411 = pneg %p150
      $region42: #{tpu_custom_call.1} parent=39 // pred_check_branch
        %413 = sbr.rel (%p411) target = $region44
      $region43: #{tpu_custom_call.1} parent=39 // pred_region
        _
      $region44: #{tpu_custom_call.1} parent=39 // pred_fallthru
        _
    $region40: #{tpu_custom_call.1} parent=5 // pred_fallthru
      _
    %p414 = scmp.le.s32.totalorder 2, %s12
    // Predicated region
    $region45: #{tpu_custom_call.1} parent=5 // pred_check
      %p415 = pneg %p414
    $region46: #{tpu_custom_call.1} parent=5 // pred_check_branch
      %417 = sbr.rel (%p415) target = $region48
    $region47: #{tpu_custom_call.1} parent=5 // pred_region
      %s418 = ssub.s32 %s12, 2
      // Predicated region
      $region49: #{tpu_custom_call.1} parent=47 // pred_check
        %p419 = pneg %p156
      $region50: #{tpu_custom_call.1} parent=47 // pred_check_branch
        %421 = sbr.rel (%p419) target = $region52
      $region51: #{tpu_custom_call.1} parent=47 // pred_region
        %p422 = scmp.lt.s32.totalorder %s18, 1
        %s423 = scalar_select %p422, %s18, 1
        %s424 = smul.addr %s423, 8
        %s425 = scalar_lea.vmem %s5, %s424
      $region52: #{tpu_custom_call.1} parent=47 // pred_fallthru
        _
    $region48: #{tpu_custom_call.1} parent=5 // pred_fallthru
      _
  $region6: #{tpu_custom_call.1} parent=0 // loop_footer
    %s16 = sadd.s32 1, %s12
  $region7: #{tpu_custom_call.1} parent=0 // loop_footer_branch
    %11 = sbr.rel target = $region3
  $region8: #{tpu_custom_call.1} parent=0 // loop_exit
    _

</llo_original>
